<compile_context>
chip_gen: v7x
topology: tpu7x:2x2x1
jax: 0.10.0
libtpu: 0.0.40
codegen_flags: <defaults>
</compile_context>

<pallas_src>
import numpy as np
import jax
import jax.numpy as jnp
from jax import lax
from jax.experimental import pallas as pl
from jax.experimental.pallas import tpu as pltpu


def _ltrace_kernel(x_ref, sel_ref, o_ref):
    """x_ref: (tm, C) flattened-site rows; sel_ref: (C, 2L) 0/1 selector.

    o_ref[r, 2l+c] = sum_i x_ref[r, (D+l)*rep*rep*2 + i*2*(rep+1) + c],
    computed as a single MXU matmul with f32 accumulation.
    """
    o_ref[...] = jnp.dot(
        x_ref[...],
        sel_ref[...],
        preferred_element_type=jnp.float32,
        precision=lax.Precision.HIGHEST,  # exact: selector entries are 0/1
    ).astype(o_ref.dtype)


def _round_up(a: int, b: int) -> int:
    return (a + b - 1) // b * b


def _trace_selector(n_dims: int, n_loops: int, rep: int, dtype):
    """(C, 2L) 0/1 matrix: column 2l+c sums the diagonal (i, i, c) of loop l."""
    row = rep * rep * 2
    C = (n_dims + n_loops) * row
    sel = np.zeros((C, 2 * n_loops), dtype=np.float32)
    for l in range(n_loops):
        for i in range(rep):
            for c in range(2):
                sel[(n_dims + l) * row + i * 2 * (rep + 1) + c, 2 * l + c] = 1.0
    return jnp.asarray(sel, dtype=dtype)


def ltrace(x: jax.Array, dims) -> jax.Array:
    """Pallas implementation of LTrace.forward.

    x: [B, num_sites, D + L, rep, rep, 2]  ->  [B, num_sites, L, 2]
    """
    D = len(dims)
    B, S, CH, N, N2, two = x.shape
    assert N == N2 and two == 2
    L = CH - D
    assert L >= 1, "input must contain at least one Wilson-loop channel"

    C = CH * N * N * 2        # lanes per site (all channels, flattened)
    C_out = 2 * L             # output lanes per site: (loop, re/im)
    M = B * S                 # rows

    x_flat = x.reshape(M, C)  # contiguous row-major: free view, no copy
    sel = _trace_selector(D, L, N, x.dtype)

    itemsize = jnp.dtype(x.dtype).itemsize
    sub = {4: 8, 2: 16, 1: 32}.get(itemsize, 8)   # dtype-aware sublane multiple

    # Padded VMEM bytes per row for one input + one output buffer
    # (last dim pads to 128 lanes in VMEM).
    padded_row = (_round_up(C, 128) + _round_up(C_out, 128)) * itemsize
    vmem_budget = 24 * 1024 * 1024   # 2x in + 2x out buffers stay v7x-safe
    tm = max(sub, (vmem_budget // (2 * padded_row)) // sub * sub)
    if M <= sub:
        tm = M                        # single full-extent block (always legal)
    else:
        # Guarantee >= 2 grid steps so both v7x TensorCores get work.
        tm = min(tm, _round_up(pl.cdiv(M, 2), sub))
    grid = (pl.cdiv(M, tm),)          # masked tail block if M % tm != 0

    out_flat = pl.pallas_call(
        _ltrace_kernel,
        out_shape=jax.ShapeDtypeStruct((M, C_out), x.dtype),
        grid=grid,
        in_specs=[
            pl.BlockSpec((tm, C), lambda i: (i, 0)),
            pl.BlockSpec((C, C_out), lambda i: (0, 0)),   # resident selector
        ],
        out_specs=pl.BlockSpec((tm, C_out), lambda i: (i, 0)),
        compiler_params=pltpu.CompilerParams(
            dimension_semantics=("parallel",),
            vmem_limit_bytes=32 * 1024 * 1024,
        ),
        cost_estimate=pl.CostEstimate(
            flops=int(2 * M * C * C_out),
            transcendentals=0,
            bytes_accessed=int((M * (C + C_out) + C * C_out) * itemsize),
        ),
    )(x_flat, sel)

    return out_flat.reshape(B, S, L, 2)


def _ltrace_ref(x, dims):
    """Pure-JAX reference for correctness checking."""
    D = len(dims)
    return jnp.einsum('bxwiic->bxwc', x[:, :, D:])


if __name__ == "__main__":
    key = jax.random.PRNGKey(0)
    k1, k2 = jax.random.split(key)

    # Case 1: SU(3)-like — 8x8 lattice (D=2), 3 Wilson loops, rep=3.
    dims1 = [8, 8]
    B1, S1, L1, N1 = 2, 8 * 8, 3, 3
    x1 = jax.random.normal(k1, (B1, S1, len(dims1) + L1, N1, N1, 2), jnp.float32)
    y1 = jax.block_until_ready(ltrace(x1, dims1))
    assert y1.shape == (B1, S1, L1, 2)
    assert jnp.allclose(y1, _ltrace_ref(x1, dims1), atol=1e-5, rtol=1e-5)

    # Case 2: SU(2)-like — 3x4x3 lattice (D=3), 4 loops, rep=2; exercises a
    # masked tail block (M = 36 with tm = 24).
    dims2 = [3, 4, 3]
    B2, S2, L2, N2 = 1, 3 * 4 * 3, 4, 2
    x2 = jax.random.normal(k2, (B2, S2, len(dims2) + L2, N2, N2, 2), jnp.float32)
    y2 = jax.block_until_ready(ltrace(x2, dims2))
    assert y2.shape == (B2, S2, L2, 2)
    assert jnp.allclose(y2, _ltrace_ref(x2, dims2), atol=1e-5, rtol=1e-5)

    print("KERNEL_OK")
</pallas_src>

<mosaic_0001>
module attributes {stable_mosaic.version = 11 : i64} {
  func.func @_ltrace_kernel(%arg0: i32, %arg1: memref<64x90xf32, #tpu.memory_space<vmem>>, %arg2: memref<90x6xf32, #tpu.memory_space<vmem>>, %arg3: memref<64x6xf32, #tpu.memory_space<vmem>>) attributes {dimension_semantics = [#tpu.dimension_semantics<parallel>], iteration_bounds = array<i64: 2>, scalar_prefetch = 0 : i64, scratch_operands = 0 : i64, tpu.core_type = #tpu.core_type<tc>, window_params = [{transform_indices = @transform_0, window_bounds = array<i64: 64, 90>}, {pipeline_mode = #tpu.pipeline_mode<synchronous>, transform_indices = @transform_1, window_bounds = array<i64: 90, 6>}, {transform_indices = @transform_2, window_bounds = array<i64: 64, 6>}]} {
    %c0 = arith.constant 0 : index
    %c0_0 = arith.constant 0 : index
    %0 = vector.load %arg1[%c0, %c0_0] : memref<64x90xf32, #tpu.memory_space<vmem>>, vector<64x90xf32>
    %c0_1 = arith.constant 0 : index
    %c0_2 = arith.constant 0 : index
    %1 = vector.load %arg2[%c0_1, %c0_2] : memref<90x6xf32, #tpu.memory_space<vmem>>, vector<90x6xf32>
    %cst = arith.constant dense<0.000000e+00> : vector<64x6xf32>
    %2 = tpu.matmul %0, %1, %cst {dimension_numbers = #tpu.dot_dimension_numbers<[1], [0], [0], [1], [0, 0, 1, 1], [], []>, precision = #tpu.contract_precision<fp32>} : vector<64x90xf32>, vector<90x6xf32>, vector<64x6xf32> -> vector<64x6xf32>
    %c0_3 = arith.constant 0 : index
    %c0_4 = arith.constant 0 : index
    %3 = vector.load %arg3[%c0_3, %c0_4] : memref<64x6xf32, #tpu.memory_space<vmem>>, vector<64x6xf32>
    tpu.vector_store %arg3[%c0_3, %c0_4], %2 {strides = array<i32>} : memref<64x6xf32, #tpu.memory_space<vmem>>, vector<64x6xf32>,
    return
  }
  func.func @transform_0(%arg0: i32) -> (i32, i32) {
    %c0_i32 = arith.constant 0 : i32
    %c0_i32_0 = arith.constant 0 : i32
    return %arg0, %c0_i32 : i32, i32
  }
  func.func @transform_1(%arg0: i32) -> (i32, i32) {
    %c0_i32 = arith.constant 0 : i32
    %c0_i32_0 = arith.constant 0 : i32
    %c0_i32_1 = arith.constant 0 : i32
    return %c0_i32, %c0_i32_0 : i32, i32
  }
  func.func @transform_2(%arg0: i32) -> (i32, i32) {
    %c0_i32 = arith.constant 0 : i32
    %c0_i32_0 = arith.constant 0 : i32
    return %arg0, %c0_i32 : i32, i32
  }
}

</mosaic_0001>

<llo_original>
// kernel: tpu_custom_call.1
$region0: #{tpu_custom_call.1}
  #allocation0 [shape = 'u32[]', space=smem, size = 0x4, offset = 0x4, fixed_abs, tag = 'smem constant byte address 0x4 - core index']
  #allocation1 [shape = 'u32[144,128]{1,0:T(1,128)}', space=vmem, size = 0x12000, scoped, tag = 'internal scratch']
  %s0 = inlined_call_operand.vmem [shape: f32[128,90], index: 0, kind: input, shape index: {}]
  %s1 = inlined_call_operand.vmem [shape: f32[90,6], index: 1, kind: input, shape index: {}]
  %s2 = inlined_call_operand.vmem [shape: f32[128,6], index: 2, kind: output, shape index: {}]
  %s3 = sld [smem:[#allocation0]]
  $region41: #{tpu_custom_call.1} parent=0
    _
  %s5 = ssub.s32 1, %s3
  %s6 = scalar_select 0, %s5, %s3
  loop: start=0, step=1, limit=4
  $region2: #{tpu_custom_call.1} parent=0 // loop_pre_header
    _
  $region3: #{tpu_custom_call.1} parent=0 // loop_header
    %s8 = sphi 0, %s12
    %p9 = scmp.ge.s32.totalorder %s8, 4
    %s18 = sphi 0, %s20
    %s21 = sphi 0, %s18
    %s22 = sphi 0, %s21
    %s38 = sphi 0, %s22
    %s42 = sphi 0, %s42
    %s44 = sphi 0, %s42
    %s45 = sphi 0, %s44
    %s59 = sphi 0, %s45
    %s65 = sphi 0, %s67
    %s68 = sphi 0, %s65
    %s69 = sphi 0, %s68
    %s85 = sphi 0, %s69
  $region4: #{tpu_custom_call.1} parent=0 // loop_header_branch
    %11 = sbr.rel (%p9) target = $region8
  $region5: #{tpu_custom_call.1} parent=0 // loop_body
    %s13 = ssub.s32 %s8, 1
    %s14 = ssub.s32 %s8, 2
    %s15 = sadd.s32 %s8, 1
    %s16 = ssub.s32 %s8, %s15
    %p17 = scmp.eq.s32.totalorder %s16, 0
    %s19 = sadd.s32 %s18, 1
    %s20 = scalar_select %p17, %s18, %s19
    %p23 = pneg %p17
    %p24 = scmp.eq.s32.totalorder %s8, 1
    %p25 = por %p23, %p24
    %p26 = scmp.ne.s32.totalorder %s18, %s21
    %p27 = scmp.eq.s32.totalorder %s8, 0
    %p28 = por %p26, %p27
    %p29 = scmp.ne.s32.totalorder %s18, %s21
    %p30 = scmp.eq.s32.totalorder %s13, 1
    %p31 = por %p29, %p30
    %p32 = scmp.ne.s32.totalorder %s21, %s22
    %p33 = scmp.eq.s32.totalorder %s13, 0
    %p34 = por %p32, %p33
    %p35 = scmp.ne.s32.totalorder %s21, %s22
    %p36 = scmp.eq.s32.totalorder %s14, 1
    %p37 = por %p35, %p36
    %p39 = scmp.ne.s32.totalorder %s22, %s38
    %p40 = scmp.eq.s32.totalorder %s14, 0
    %p41 = por %p39, %p40
    %s43 = sadd.s32 %s42, 1
    %p46 = scmp.eq.s32.totalorder %s8, 1
    %p47 = scmp.ne.s32.totalorder %s42, %s44
    %p48 = scmp.eq.s32.totalorder %s8, 0
    %p49 = por %p47, %p48
    %p50 = scmp.ne.s32.totalorder %s42, %s44
    %p51 = scmp.eq.s32.totalorder %s13, 1
    %p52 = por %p50, %p51
    %p53 = scmp.ne.s32.totalorder %s44, %s45
    %p54 = scmp.eq.s32.totalorder %s13, 0
    %p55 = por %p53, %p54
    %p56 = scmp.ne.s32.totalorder %s44, %s45
    %p57 = scmp.eq.s32.totalorder %s14, 1
    %p58 = por %p56, %p57
    %p60 = scmp.ne.s32.totalorder %s45, %s59
    %p61 = scmp.eq.s32.totalorder %s14, 0
    %p62 = por %p60, %p61
    %s63 = ssub.s32 %s8, %s15
    %p64 = scmp.eq.s32.totalorder %s63, 0
    %s66 = sadd.s32 %s65, 1
    %s67 = scalar_select %p64, %s65, %s66
    %p70 = pneg %p64
    %p71 = scmp.eq.s32.totalorder %s8, 1
    %p72 = por %p70, %p71
    %p73 = scmp.ne.s32.totalorder %s65, %s68
    %p74 = scmp.eq.s32.totalorder %s8, 0
    %p75 = por %p73, %p74
    %p76 = scmp.ne.s32.totalorder %s65, %s68
    %p77 = scmp.eq.s32.totalorder %s13, 1
    %p78 = por %p76, %p77
    %p79 = scmp.ne.s32.totalorder %s68, %s69
    %p80 = scmp.eq.s32.totalorder %s13, 0
    %p81 = por %p79, %p80
    %p82 = scmp.ne.s32.totalorder %s68, %s69
    %p83 = scmp.eq.s32.totalorder %s14, 1
    %p84 = por %p82, %p83
    %p86 = scmp.ne.s32.totalorder %s69, %s85
    %p87 = scmp.eq.s32.totalorder %s14, 0
    %p88 = por %p86, %p87
    %p89 = scmp.le.s32.totalorder 1, %s8
    %p90 = scmp.lt.s32.totalorder %s8, 3
    %p91 = pnand %p89, %p90
    %p92 = pneg %p91
    // Predicated region
    $region9: #{tpu_custom_call.1} parent=5 // pred_check
      _
    $region10: #{tpu_custom_call.1} parent=5 // pred_check_branch
      %94 = sbr.rel (%p91) target = $region12
    $region11: #{tpu_custom_call.1} parent=5 // pred_region
      %s95 = ssub.s32 %s8, 1
      // Predicated region
      $region13: #{tpu_custom_call.1} parent=11 // pred_check
        %p96 = pneg %p55
      $region14: #{tpu_custom_call.1} parent=11 // pred_check_branch
        %98 = sbr.rel (%p96) target = $region16
      $region15: #{tpu_custom_call.1} parent=11 // pred_region
        _
      $region16: #{tpu_custom_call.1} parent=11 // pred_fallthru
        _
    $region12: #{tpu_custom_call.1} parent=5 // pred_fallthru
      _
    %p99 = scmp.lt.s32.totalorder %s8, 2
    // Predicated region
    $region17: #{tpu_custom_call.1} parent=5 // pred_check
      %p100 = pneg %p99
    $region18: #{tpu_custom_call.1} parent=5 // pred_check_branch
      %102 = sbr.rel (%p100) target = $region20
    $region19: #{tpu_custom_call.1} parent=5 // pred_region
      // Predicated region
      $region21: #{tpu_custom_call.1} parent=19 // pred_check
        %p103 = pneg %p28
      $region22: #{tpu_custom_call.1} parent=19 // pred_check_branch
        %105 = sbr.rel (%p103) target = $region24
      $region23: #{tpu_custom_call.1} parent=19 // pred_region
        %s106 = smul.u32 8, %s8
        %p107 = scmp.lt.s32.totalorder %s106, 15
        %s108 = scalar_select %p107, %s106, 15
        %s109 = smul.addr %s108, 8
        %s110 = scalar_lea.vmem %s0, %s109
        %s111 = smul.u32 8, %s8
      $region24: #{tpu_custom_call.1} parent=19 // pred_fallthru
        _
    $region20: #{tpu_custom_call.1} parent=5 // pred_fallthru
      _
    %p112 = scmp.le.s32.totalorder 1, %s8
    %p113 = scmp.lt.s32.totalorder %s8, 3
    %p114 = pnand %p112, %p113
    %p115 = pneg %p114
    // Predicated region
    $region25: #{tpu_custom_call.1} parent=5 // pred_check
      _
    $region26: #{tpu_custom_call.1} parent=5 // pred_check_branch
      %117 = sbr.rel (%p114) target = $region28
    $region27: #{tpu_custom_call.1} parent=5 // pred_region
      %s118 = ssub.s32 %s8, 1
      %s119 = smul.u32 8, %s13
      %p120 = scmp.lt.s32.totalorder %s119, 15
      %s121 = scalar_select %p120, %s119, 15
      %s122 = smul.addr %s121, 8
      %s123 = scalar_lea.vmem %s0, %s122
      %p124 = pneg %p34
      %p125 = pneg %p31
      %p126 = pneg %p55
      %p127 = pneg %p52
      %p128 = pneg %p81
      %p129 = pneg %p78
      %s130 = smul.u32 8, %s13
      %p131 = scmp.lt.s32.totalorder %s130, 15
      %s132 = scalar_select %p131, %s130, 15
      %s133 = smul.addr %s132, 8
      %s134 = scalar_lea.vmem %s2, %s133
      %s135 = smul.u32 8, %s13
      %p136 = scmp.lt.s32.totalorder %s135, 15
      %s137 = scalar_select %p136, %s135, 15
      %s138 = smul.addr %s137, 8
      %s139 = scalar_lea.vmem %s0, %s138
      %s140 = smul.u32 8, %s13
      %s141 = smul.u32 8, %s13
      %p142 = scmp.lt.s32.totalorder %s141, 15
      %s143 = scalar_select %p142, %s141, 15
      %s144 = smul.addr %s143, 8
      %s145 = scalar_lea.vmem %s2, %s144
      %s146 = smul.u32 8, %s13
      %v147 = vld [vmem:[%s139] sm:$0xff]
      %v148 = vld [vmem:[%s139 + $0x8] sm:$0xff]
      %v149 = vld [vmem:[%s139 + $0x10] sm:$0xff]
      %v150 = vld [vmem:[%s139 + $0x18] sm:$0xff]
      %v151 = vld [vmem:[%s139 + $0x20] sm:$0xff]
      %v152 = vld [vmem:[%s139 + $0x28] sm:$0xff]
      %v153 = vld [vmem:[%s139 + $0x30] sm:$0xff]
      %v154 = vld [vmem:[%s139 + $0x38] sm:$0xff]
      %v155 = vld [vmem:[%s1] sm:$0xff]
      %v156 = vld [vmem:[%s1 + $0x8] sm:$0xff]
      %v157 = vld [vmem:[%s1 + $0x10] sm:$0xff]
      %v158 = vld [vmem:[%s1 + $0x18] sm:$0xff]
      %v159 = vld [vmem:[%s1 + $0x20] sm:$0xff]
      %v160 = vld [vmem:[%s1 + $0x28] sm:$0xff]
      %v161 = vld [vmem:[%s1 + $0x30] sm:$0xff]
      %v162 = vld [vmem:[%s1 + $0x38] sm:$0xff]
      %v163 = vld [vmem:[%s1 + $0x40] sm:$0xff]
      %v164 = vld [vmem:[%s1 + $0x48] sm:$0xff]
      %v165 = vld [vmem:[%s1 + $0x50] sm:$0xff]
      %v166 = vld [vmem:[%s1 + $0x58] sm:$0x3]
      %vm167 = vcmask 736256
      %v169 = vsel %vm167, %v147, 0
      %v172 = vsel %vm167, %v148, 0
      %v175 = vsel %vm167, %v149, 0
      %v178 = vsel %vm167, %v150, 0
      %v181 = vsel %vm167, %v151, 0
      %v184 = vsel %vm167, %v152, 0
      %v187 = vsel %vm167, %v153, 0
      %v190 = vsel %vm167, %v154, 0
      %vm192 = vcmask 1041408
      %v194 = vsel %vm192, %v166, 0
      %196 = vmatprep.subr.mxu0 0.0
      %v197 = vand.u32 %v155, 4294901760
      %198 = vmatpush1.msra.mxu0 %v197
      %199 = vmatprep.subr.mxu0 0.0
      %v200 = vand.u32 %v156, 4294901760
      %201 = vmatpush1.msra.mxu0 %v200
      %202 = vmatprep.subr.mxu0 0.0
      %v203 = vand.u32 %v157, 4294901760
      %204 = vmatpush1.msra.mxu0 %v203
      %205 = vmatprep.subr.mxu0 0.0
      %v206 = vand.u32 %v158, 4294901760
      %207 = vmatpush1.msra.mxu0 %v206
      %208 = vmatprep.subr.mxu0 0.0
      %v209 = vand.u32 %v159, 4294901760
      %210 = vmatpush1.msra.mxu0 %v209
      %211 = vmatprep.subr.mxu0 0.0
      %v212 = vand.u32 %v160, 4294901760
      %213 = vmatpush1.msra.mxu0 %v212
      %214 = vmatprep.subr.mxu0 0.0
      %v215 = vand.u32 %v161, 4294901760
      %216 = vmatpush1.msra.mxu0 %v215
      %217 = vmatprep.subr.mxu0 0.0
      %v218 = vand.u32 %v162, 4294901760
      %219 = vmatpush1.msra.mxu0 %v218
      %220 = vmatprep.subr.mxu0 0.0
      %v221 = vand.u32 %v163, 4294901760
      %222 = vmatpush1.msra.mxu0 %v221
      %223 = vmatprep.subr.mxu0 0.0
      %v224 = vand.u32 %v164, 4294901760
      %225 = vmatpush1.msra.mxu0 %v224
      %226 = vmatprep.subr.mxu0 0.0
      %v227 = vand.u32 %v165, 4294901760
      %228 = vmatpush1.msra.mxu0 %v227
      %229 = vmatprep.subr.mxu0 0.0
      %v230 = vand.u32 %v194, 4294901760
      %231 = vmatpush1.msra.mxu0 %v230
      %232 = vmatprep.subr.mxu0 0.0
      %233 = vmatpush1.msra.mxu0 0.0
      %234 = vmatprep.subr.mxu0 0.0
      %235 = vmatpush1.msra.mxu0 0.0
      %236 = vmatprep.subr.mxu0 0.0
      %237 = vmatpush1.msra.mxu0 0.0
      %238 = vmatprep.subr.mxu0 0.0
      %239 = vmatpush1.msra.mxu0 0.0
      %240 = vmatprep.subr.mxu0 0.0
      %241 = vmatpush1.msra.mxu0 0.0
      %242 = vmatprep.subr.mxu0 0.0
      %243 = vmatpush1.msra.mxu0 0.0
      %244 = vmatprep.subr.mxu0 0.0
      %245 = vmatpush1.msra.mxu0 0.0
      %246 = vmatprep.subr.mxu0 0.0
      %247 = vmatpush1.msra.mxu0 0.0
      %248 = vmatprep.subr.mxu0 0.0
      %249 = vmatpush1.msra.mxu0 0.0
      %250 = vmatprep.subr.mxu0 0.0
      %251 = vmatpush1.msra.mxu0 0.0
      %252 = vmatprep.subr.mxu0 0.0
      %253 = vmatpush1.msra.mxu0 0.0
      %254 = vmatprep.subr.mxu0 0.0
      %255 = vmatpush1.msra.mxu0 0.0
      %256 = vmatprep.subr.mxu0 0.0
      %257 = vmatpush1.msra.mxu0 0.0
      %258 = vmatprep.subr.mxu0 0.0
      %259 = vmatpush1.msra.mxu0 0.0
      %260 = vmatprep.subr.mxu0 0.0
      %261 = vmatpush1.msra.mxu0 0.0
      %262 = vmatprep.subr.mxu0 0.0
      %263 = vmatpush1.msra.mxu0 0.0
      %264 = vmatprep.subr.mxu0 0.0
      %265 = vmatpush1.msra.mxu0 0.0
      %266 = vmatprep.subr.mxu0 0.0
      %267 = vmatpush1.msra.mxu0 0.0
      %268 = vmatprep.subr.mxu0 0.0
      %269 = vmatpush1.msra.mxu0 0.0
      %270 = vmatprep.subr.mxu0 0.0
      %271 = vmatpush1.msra.mxu0 0.0
      %272 = vmatprep.mubr.f32.mxu0 0.0
      %v273 = vand.u32 %v169, 4294901760
      %v274 = vsub.f32 %v169, %v273
      %v275 = vand.u32 %v274, 4294901760
      %v276 = vsub.f32 %v274, %v275
      %v277 = vand.u32 %v276, 4294901760
      %278 = vmatmul.mubr.f32.gmra.mrb[0].mxu0 %v277
      %v279 = vpop.f32.mrb[0].mxu0
      %v280 = vadd.f32 0.0, %v279
      %v281 = vpop.f32.mrb[0].mxu0
      %282 = vmatprep.mubr.f32.mxu0 0.0
      %v283 = vand.u32 %v172, 4294901760
      %v284 = vsub.f32 %v172, %v283
      %v285 = vand.u32 %v284, 4294901760
      %v286 = vsub.f32 %v284, %v285
      %v287 = vand.u32 %v286, 4294901760
      %288 = vmatmul.mubr.f32.gmra.mrb[0].mxu0 %v287
      %v289 = vpop.f32.mrb[0].mxu0
      %v290 = vadd.f32 0.0, %v289
      %v291 = vpop.f32.mrb[0].mxu0
      %292 = vmatprep.mubr.f32.mxu0 0.0
      %v293 = vand.u32 %v175, 4294901760
      %v294 = vsub.f32 %v175, %v293
      %v295 = vand.u32 %v294, 4294901760
      %v296 = vsub.f32 %v294, %v295
      %v297 = vand.u32 %v296, 4294901760
      %298 = vmatmul.mubr.f32.gmra.mrb[0].mxu0 %v297
      %v299 = vpop.f32.mrb[0].mxu0
      %v300 = vadd.f32 0.0, %v299
      %v301 = vpop.f32.mrb[0].mxu0
      %302 = vmatprep.mubr.f32.mxu0 0.0
      %v303 = vand.u32 %v178, 4294901760
      %v304 = vsub.f32 %v178, %v303
      %v305 = vand.u32 %v304, 4294901760
      %v306 = vsub.f32 %v304, %v305
      %v307 = vand.u32 %v306, 4294901760
      %308 = vmatmul.mubr.f32.gmra.mrb[0].mxu0 %v307
      %v309 = vpop.f32.mrb[0].mxu0
      %v310 = vadd.f32 0.0, %v309
      %v311 = vpop.f32.mrb[0].mxu0
      %312 = vmatprep.mubr.f32.mxu0 0.0
      %v313 = vand.u32 %v181, 4294901760
      %v314 = vsub.f32 %v181, %v313
      %v315 = vand.u32 %v314, 4294901760
      %v316 = vsub.f32 %v314, %v315
      %v317 = vand.u32 %v316, 4294901760
      %318 = vmatmul.mubr.f32.gmra.mrb[0].mxu0 %v317
      %v319 = vpop.f32.mrb[0].mxu0
      %v320 = vadd.f32 0.0, %v319
      %v321 = vpop.f32.mrb[0].mxu0
      %322 = vmatprep.mubr.f32.mxu0 0.0
      %v323 = vand.u32 %v184, 4294901760
      %v324 = vsub.f32 %v184, %v323
      %v325 = vand.u32 %v324, 4294901760
      %v326 = vsub.f32 %v324, %v325
      %v327 = vand.u32 %v326, 4294901760
      %328 = vmatmul.mubr.f32.gmra.mrb[0].mxu0 %v327
      %v329 = vpop.f32.mrb[0].mxu0
      %v330 = vadd.f32 0.0, %v329
      %v331 = vpop.f32.mrb[0].mxu0
      %332 = vmatprep.mubr.f32.mxu0 0.0
      %v333 = vand.u32 %v187, 4294901760
      %v334 = vsub.f32 %v187, %v333
      %v335 = vand.u32 %v334, 4294901760
      %v336 = vsub.f32 %v334, %v335
      %v337 = vand.u32 %v336, 4294901760
      %338 = vmatmul.mubr.f32.gmra.mrb[0].mxu0 %v337
      %v339 = vpop.f32.mrb[0].mxu0
      %v340 = vadd.f32 0.0, %v339
      %v341 = vpop.f32.mrb[0].mxu0
      %342 = vmatprep.mubr.f32.mxu0 0.0
      %v343 = vand.u32 %v190, 4294901760
      %v344 = vsub.f32 %v190, %v343
      %v345 = vand.u32 %v344, 4294901760
      %v346 = vsub.f32 %v344, %v345
      %v347 = vand.u32 %v346, 4294901760
      %348 = vmatmul.mubr.f32.gmra.mrb[0].mxu0 %v347
      %v349 = vpop.f32.mrb[0].mxu0
      %v350 = vadd.f32 0.0, %v349
      %v351 = vpop.f32.mrb[0].mxu0
      %352 = vdwg.mxu0
      %353 = vmatprep.subr.mxu0 0.0
      %v354 = vand.u32 %v155, 4294901760
      %v355 = vsub.f32 %v155, %v354
      %v356 = vand.u32 %v355, 4294901760
      %v357 = vsub.f32 %v355, %v356
      %v358 = vand.u32 %v357, 4294901760
      %359 = vmatpush1.msra.mxu0 %v358
      %360 = vmatprep.subr.mxu0 0.0
      %v361 = vand.u32 %v156, 4294901760
      %v362 = vsub.f32 %v156, %v361
      %v363 = vand.u32 %v362, 4294901760
      %v364 = vsub.f32 %v362, %v363
      %v365 = vand.u32 %v364, 4294901760
      %366 = vmatpush1.msra.mxu0 %v365
      %367 = vmatprep.subr.mxu0 0.0
      %v368 = vand.u32 %v157, 4294901760
      %v369 = vsub.f32 %v157, %v368
      %v370 = vand.u32 %v369, 4294901760
      %v371 = vsub.f32 %v369, %v370
      %v372 = vand.u32 %v371, 4294901760
      %373 = vmatpush1.msra.mxu0 %v372
      %374 = vmatprep.subr.mxu0 0.0
      %v375 = vand.u32 %v158, 4294901760
      %v376 = vsub.f32 %v158, %v375
      %v377 = vand.u32 %v376, 4294901760
      %v378 = vsub.f32 %v376, %v377
      %v379 = vand.u32 %v378, 4294901760
      %380 = vmatpush1.msra.mxu0 %v379
      %381 = vmatprep.subr.mxu0 0.0
      %v382 = vand.u32 %v159, 4294901760
      %v383 = vsub.f32 %v159, %v382
      %v384 = vand.u32 %v383, 4294901760
      %v385 = vsub.f32 %v383, %v384
      %v386 = vand.u32 %v385, 4294901760
      %387 = vmatpush1.msra.mxu0 %v386
      %388 = vmatprep.subr.mxu0 0.0
      %v389 = vand.u32 %v160, 4294901760
      %v390 = vsub.f32 %v160, %v389
      %v391 = vand.u32 %v390, 4294901760
      %v392 = vsub.f32 %v390, %v391
      %v393 = vand.u32 %v392, 4294901760
      %394 = vmatpush1.msra.mxu0 %v393
      %395 = vmatprep.subr.mxu0 0.0
      %v396 = vand.u32 %v161, 4294901760
      %v397 = vsub.f32 %v161, %v396
      %v398 = vand.u32 %v397, 4294901760
      %v399 = vsub.f32 %v397, %v398
      %v400 = vand.u32 %v399, 4294901760
      %401 = vmatpush1.msra.mxu0 %v400
      %402 = vmatprep.subr.mxu0 0.0
      %v403 = vand.u32 %v162, 4294901760
      %v404 = vsub.f32 %v162, %v403
      %v405 = vand.u32 %v404, 4294901760
      %v406 = vsub.f32 %v404, %v405
      %v407 = vand.u32 %v406, 4294901760
      %408 = vmatpush1.msra.mxu0 %v407
      %409 = vmatprep.subr.mxu0 0.0
      %v410 = vand.u32 %v163, 4294901760
      %v411 = vsub.f32 %v163, %v410
      %v412 = vand.u32 %v411, 4294901760
      %v413 = vsub.f32 %v411, %v412
      %v414 = vand.u32 %v413, 4294901760
      %415 = vmatpush1.msra.mxu0 %v414
      %416 = vmatprep.subr.mxu0 0.0
      %v417 = vand.u32 %v164, 4294901760
      %v418 = vsub.f32 %v164, %v417
      %v419 = vand.u32 %v418, 4294901760
      %v420 = vsub.f32 %v418, %v419
      %v421 = vand.u32 %v420, 4294901760
      %422 = vmatpush1.msra.mxu0 %v421
      %423 = vmatprep.subr.mxu0 0.0
      %v424 = vand.u32 %v165, 4294901760
      %v425 = vsub.f32 %v165, %v424
      %v426 = vand.u32 %v425, 4294901760
      %v427 = vsub.f32 %v425, %v426
      %v428 = vand.u32 %v427, 4294901760
      %429 = vmatpush1.msra.mxu0 %v428
      %430 = vmatprep.subr.mxu0 0.0
      %v431 = vand.u32 %v194, 4294901760
      %v432 = vsub.f32 %v194, %v431
      %v433 = vand.u32 %v432, 4294901760
      %v434 = vsub.f32 %v432, %v433
      %v435 = vand.u32 %v434, 4294901760
      %436 = vmatpush1.msra.mxu0 %v435
      %437 = vmatprep.subr.mxu0 0.0
      %438 = vmatpush1.msra.mxu0 0.0
      %439 = vmatprep.subr.mxu0 0.0
      %440 = vmatpush1.msra.mxu0 0.0
      %441 = vmatprep.subr.mxu0 0.0
      %442 = vmatpush1.msra.mxu0 0.0
      %443 = vmatprep.subr.mxu0 0.0
      %444 = vmatpush1.msra.mxu0 0.0
      %445 = vmatprep.subr.mxu0 0.0
      %446 = vmatpush1.msra.mxu0 0.0
      %447 = vmatprep.subr.mxu0 0.0
      %448 = vmatpush1.msra.mxu0 0.0
      %449 = vmatprep.subr.mxu0 0.0
      %450 = vmatpush1.msra.mxu0 0.0
      %451 = vmatprep.subr.mxu0 0.0
      %452 = vmatpush1.msra.mxu0 0.0
      %453 = vmatprep.subr.mxu0 0.0
      %454 = vmatpush1.msra.mxu0 0.0
      %455 = vmatprep.subr.mxu0 0.0
      %456 = vmatpush1.msra.mxu0 0.0
      %457 = vmatprep.subr.mxu0 0.0
      %458 = vmatpush1.msra.mxu0 0.0
      %459 = vmatprep.subr.mxu0 0.0
      %460 = vmatpush1.msra.mxu0 0.0
      %461 = vmatprep.subr.mxu0 0.0
      %462 = vmatpush1.msra.mxu0 0.0
      %463 = vmatprep.subr.mxu0 0.0
      %464 = vmatpush1.msra.mxu0 0.0
      %465 = vmatprep.subr.mxu0 0.0
      %466 = vmatpush1.msra.mxu0 0.0
      %467 = vmatprep.subr.mxu0 0.0
      %468 = vmatpush1.msra.mxu0 0.0
      %469 = vmatprep.subr.mxu0 0.0
      %470 = vmatpush1.msra.mxu0 0.0
      %471 = vmatprep.subr.mxu0 0.0
      %472 = vmatpush1.msra.mxu0 0.0
      %473 = vmatprep.subr.mxu0 0.0
      %474 = vmatpush1.msra.mxu0 0.0
      %475 = vmatprep.subr.mxu0 0.0
      %476 = vmatpush1.msra.mxu0 0.0
      %477 = vmatprep.mubr.f32.mxu0 0.0
      %v478 = vand.u32 %v169, 4294901760
      %479 = vmatmul.mubr.f32.gmra.mrb[0].mxu0 %v478
      %v480 = vpop.f32.mrb[0].mxu0
      %v481 = vadd.f32 %v280, %v480
      %v482 = vpop.f32.mrb[0].mxu0
      %483 = vmatprep.mubr.f32.mxu0 0.0
      %v484 = vand.u32 %v172, 4294901760
      %485 = vmatmul.mubr.f32.gmra.mrb[0].mxu0 %v484
      %v486 = vpop.f32.mrb[0].mxu0
      %v487 = vadd.f32 %v290, %v486
      %v488 = vpop.f32.mrb[0].mxu0
      %489 = vmatprep.mubr.f32.mxu0 0.0
      %v490 = vand.u32 %v175, 4294901760
      %491 = vmatmul.mubr.f32.gmra.mrb[0].mxu0 %v490
      %v492 = vpop.f32.mrb[0].mxu0
      %v493 = vadd.f32 %v300, %v492
      %v494 = vpop.f32.mrb[0].mxu0
      %495 = vmatprep.mubr.f32.mxu0 0.0
      %v496 = vand.u32 %v178, 4294901760
      %497 = vmatmul.mubr.f32.gmra.mrb[0].mxu0 %v496
      %v498 = vpop.f32.mrb[0].mxu0
      %v499 = vadd.f32 %v310, %v498
      %v500 = vpop.f32.mrb[0].mxu0
      %501 = vmatprep.mubr.f32.mxu0 0.0
      %v502 = vand.u32 %v181, 4294901760
      %503 = vmatmul.mubr.f32.gmra.mrb[0].mxu0 %v502
      %v504 = vpop.f32.mrb[0].mxu0
      %v505 = vadd.f32 %v320, %v504
      %v506 = vpop.f32.mrb[0].mxu0
      %507 = vmatprep.mubr.f32.mxu0 0.0
      %v508 = vand.u32 %v184, 4294901760
      %509 = vmatmul.mubr.f32.gmra.mrb[0].mxu0 %v508
      %v510 = vpop.f32.mrb[0].mxu0
      %v511 = vadd.f32 %v330, %v510
      %v512 = vpop.f32.mrb[0].mxu0
      %513 = vmatprep.mubr.f32.mxu0 0.0
      %v514 = vand.u32 %v187, 4294901760
      %515 = vmatmul.mubr.f32.gmra.mrb[0].mxu0 %v514
      %v516 = vpop.f32.mrb[0].mxu0
      %v517 = vadd.f32 %v340, %v516
      %v518 = vpop.f32.mrb[0].mxu0
      %519 = vmatprep.mubr.f32.mxu0 0.0
      %v520 = vand.u32 %v190, 4294901760
      %521 = vmatmul.mubr.f32.gmra.mrb[0].mxu0 %v520
      %v522 = vpop.f32.mrb[0].mxu0
      %v523 = vadd.f32 %v350, %v522
      %v524 = vpop.f32.mrb[0].mxu0
      %525 = vdwg.mxu0
      %526 = vmatprep.subr.mxu0 0.0
      %v527 = vand.u32 %v155, 4294901760
      %v528 = vsub.f32 %v155, %v527
      %529 = vmatpush1.msra.mxu0 %v528
      %530 = vmatprep.subr.mxu0 0.0
      %v531 = vand.u32 %v156, 4294901760
      %v532 = vsub.f32 %v156, %v531
      %533 = vmatpush1.msra.mxu0 %v532
      %534 = vmatprep.subr.mxu0 0.0
      %v535 = vand.u32 %v157, 4294901760
      %v536 = vsub.f32 %v157, %v535
      %537 = vmatpush1.msra.mxu0 %v536
      %538 = vmatprep.subr.mxu0 0.0
      %v539 = vand.u32 %v158, 4294901760
      %v540 = vsub.f32 %v158, %v539
      %541 = vmatpush1.msra.mxu0 %v540
      %542 = vmatprep.subr.mxu0 0.0
      %v543 = vand.u32 %v159, 4294901760
      %v544 = vsub.f32 %v159, %v543
      %545 = vmatpush1.msra.mxu0 %v544
      %546 = vmatprep.subr.mxu0 0.0
      %v547 = vand.u32 %v160, 4294901760
      %v548 = vsub.f32 %v160, %v547
      %549 = vmatpush1.msra.mxu0 %v548
      %550 = vmatprep.subr.mxu0 0.0
      %v551 = vand.u32 %v161, 4294901760
      %v552 = vsub.f32 %v161, %v551
      %553 = vmatpush1.msra.mxu0 %v552
      %554 = vmatprep.subr.mxu0 0.0
      %v555 = vand.u32 %v162, 4294901760
      %v556 = vsub.f32 %v162, %v555
      %557 = vmatpush1.msra.mxu0 %v556
      %558 = vmatprep.subr.mxu0 0.0
      %v559 = vand.u32 %v163, 4294901760
      %v560 = vsub.f32 %v163, %v559
      %561 = vmatpush1.msra.mxu0 %v560
      %562 = vmatprep.subr.mxu0 0.0
      %v563 = vand.u32 %v164, 4294901760
      %v564 = vsub.f32 %v164, %v563
      %565 = vmatpush1.msra.mxu0 %v564
      %566 = vmatprep.subr.mxu0 0.0
      %v567 = vand.u32 %v165, 4294901760
      %v568 = vsub.f32 %v165, %v567
      %569 = vmatpush1.msra.mxu0 %v568
      %570 = vmatprep.subr.mxu0 0.0
      %v571 = vand.u32 %v194, 4294901760
      %v572 = vsub.f32 %v194, %v571
      %573 = vmatpush1.msra.mxu0 %v572
      %574 = vmatprep.subr.mxu0 0.0
      %575 = vmatpush1.msra.mxu0 0.0
      %576 = vmatprep.subr.mxu0 0.0
      %577 = vmatpush1.msra.mxu0 0.0
      %578 = vmatprep.subr.mxu0 0.0
      %579 = vmatpush1.msra.mxu0 0.0
      %580 = vmatprep.subr.mxu0 0.0
      %581 = vmatpush1.msra.mxu0 0.0
      %582 = vmatprep.subr.mxu0 0.0
      %583 = vmatpush1.msra.mxu0 0.0
      %584 = vmatprep.subr.mxu0 0.0
      %585 = vmatpush1.msra.mxu0 0.0
      %586 = vmatprep.subr.mxu0 0.0
      %587 = vmatpush1.msra.mxu0 0.0
      %588 = vmatprep.subr.mxu0 0.0
      %589 = vmatpush1.msra.mxu0 0.0
      %590 = vmatprep.subr.mxu0 0.0
      %591 = vmatpush1.msra.mxu0 0.0
      %592 = vmatprep.subr.mxu0 0.0
      %593 = vmatpush1.msra.mxu0 0.0
      %594 = vmatprep.subr.mxu0 0.0
      %595 = vmatpush1.msra.mxu0 0.0
      %596 = vmatprep.subr.mxu0 0.0
      %597 = vmatpush1.msra.mxu0 0.0
      %598 = vmatprep.subr.mxu0 0.0
      %599 = vmatpush1.msra.mxu0 0.0
      %600 = vmatprep.subr.mxu0 0.0
      %601 = vmatpush1.msra.mxu0 0.0
      %602 = vmatprep.subr.mxu0 0.0
      %603 = vmatpush1.msra.mxu0 0.0
      %604 = vmatprep.subr.mxu0 0.0
      %605 = vmatpush1.msra.mxu0 0.0
      %606 = vmatprep.subr.mxu0 0.0
      %607 = vmatpush1.msra.mxu0 0.0
      %608 = vmatprep.subr.mxu0 0.0
      %609 = vmatpush1.msra.mxu0 0.0
      %610 = vmatprep.subr.mxu0 0.0
      %611 = vmatpush1.msra.mxu0 0.0
      %612 = vmatprep.subr.mxu0 0.0
      %613 = vmatpush1.msra.mxu0 0.0
      %614 = vmatprep.mubr.f32.mxu0 0.0
      %v615 = vand.u32 %v169, 4294901760
      %v616 = vsub.f32 %v169, %v615
      %617 = vmatmul.mubr.f32.gmra.mrb[0].mxu0 %v616
      %v618 = vpop.f32.mrb[0].mxu0
      %v619 = vadd.f32 %v481, %v618
      %v620 = vpop.f32.mrb[0].mxu0
      %621 = vmatprep.mubr.f32.mxu0 0.0
      %v622 = vand.u32 %v172, 4294901760
      %v623 = vsub.f32 %v172, %v622
      %624 = vmatmul.mubr.f32.gmra.mrb[0].mxu0 %v623
      %v625 = vpop.f32.mrb[0].mxu0
      %v626 = vadd.f32 %v487, %v625
      %v627 = vpop.f32.mrb[0].mxu0
      %628 = vmatprep.mubr.f32.mxu0 0.0
      %v629 = vand.u32 %v175, 4294901760
      %v630 = vsub.f32 %v175, %v629
      %631 = vmatmul.mubr.f32.gmra.mrb[0].mxu0 %v630
      %v632 = vpop.f32.mrb[0].mxu0
      %v633 = vadd.f32 %v493, %v632
      %v634 = vpop.f32.mrb[0].mxu0
      %635 = vmatprep.mubr.f32.mxu0 0.0
      %v636 = vand.u32 %v178, 4294901760
      %v637 = vsub.f32 %v178, %v636
      %638 = vmatmul.mubr.f32.gmra.mrb[0].mxu0 %v637
      %v639 = vpop.f32.mrb[0].mxu0
      %v640 = vadd.f32 %v499, %v639
      %v641 = vpop.f32.mrb[0].mxu0
      %642 = vmatprep.mubr.f32.mxu0 0.0
      %v643 = vand.u32 %v181, 4294901760
      %v644 = vsub.f32 %v181, %v643
      %645 = vmatmul.mubr.f32.gmra.mrb[0].mxu0 %v644
      %v646 = vpop.f32.mrb[0].mxu0
      %v647 = vadd.f32 %v505, %v646
      %v648 = vpop.f32.mrb[0].mxu0
      %649 = vmatprep.mubr.f32.mxu0 0.0
      %v650 = vand.u32 %v184, 4294901760
      %v651 = vsub.f32 %v184, %v650
      %652 = vmatmul.mubr.f32.gmra.mrb[0].mxu0 %v651
      %v653 = vpop.f32.mrb[0].mxu0
      %v654 = vadd.f32 %v511, %v653
      %v655 = vpop.f32.mrb[0].mxu0
      %656 = vmatprep.mubr.f32.mxu0 0.0
      %v657 = vand.u32 %v187, 4294901760
      %v658 = vsub.f32 %v187, %v657
      %659 = vmatmul.mubr.f32.gmra.mrb[0].mxu0 %v658
      %v660 = vpop.f32.mrb[0].mxu0
      %v661 = vadd.f32 %v517, %v660
      %v662 = vpop.f32.mrb[0].mxu0
      %663 = vmatprep.mubr.f32.mxu0 0.0
      %v664 = vand.u32 %v190, 4294901760
      %v665 = vsub.f32 %v190, %v664
      %666 = vmatmul.mubr.f32.gmra.mrb[0].mxu0 %v665
      %v667 = vpop.f32.mrb[0].mxu0
      %v668 = vadd.f32 %v523, %v667
      %v669 = vpop.f32.mrb[0].mxu0
      %670 = vdwg.mxu0
      %671 = vmatprep.subr.mxu0 0.0
      %v672 = vand.u32 %v155, 4294901760
      %673 = vmatpush1.msra.mxu0 %v672
      %674 = vmatprep.subr.mxu0 0.0
      %v675 = vand.u32 %v156, 4294901760
      %676 = vmatpush1.msra.mxu0 %v675
      %677 = vmatprep.subr.mxu0 0.0
      %v678 = vand.u32 %v157, 4294901760
      %679 = vmatpush1.msra.mxu0 %v678
      %680 = vmatprep.subr.mxu0 0.0
      %v681 = vand.u32 %v158, 4294901760
      %682 = vmatpush1.msra.mxu0 %v681
      %683 = vmatprep.subr.mxu0 0.0
      %v684 = vand.u32 %v159, 4294901760
      %685 = vmatpush1.msra.mxu0 %v684
      %686 = vmatprep.subr.mxu0 0.0
      %v687 = vand.u32 %v160, 4294901760
      %688 = vmatpush1.msra.mxu0 %v687
      %689 = vmatprep.subr.mxu0 0.0
      %v690 = vand.u32 %v161, 4294901760
      %691 = vmatpush1.msra.mxu0 %v690
      %692 = vmatprep.subr.mxu0 0.0
      %v693 = vand.u32 %v162, 4294901760
      %694 = vmatpush1.msra.mxu0 %v693
      %695 = vmatprep.subr.mxu0 0.0
      %v696 = vand.u32 %v163, 4294901760
      %697 = vmatpush1.msra.mxu0 %v696
      %698 = vmatprep.subr.mxu0 0.0
      %v699 = vand.u32 %v164, 4294901760
      %700 = vmatpush1.msra.mxu0 %v699
      %701 = vmatprep.subr.mxu0 0.0
      %v702 = vand.u32 %v165, 4294901760
      %703 = vmatpush1.msra.mxu0 %v702
      %704 = vmatprep.subr.mxu0 0.0
      %v705 = vand.u32 %v194, 4294901760
      %706 = vmatpush1.msra.mxu0 %v705
      %707 = vmatprep.subr.mxu0 0.0
      %708 = vmatpush1.msra.mxu0 0.0
      %709 = vmatprep.subr.mxu0 0.0
      %710 = vmatpush1.msra.mxu0 0.0
      %711 = vmatprep.subr.mxu0 0.0
      %712 = vmatpush1.msra.mxu0 0.0
      %713 = vmatprep.subr.mxu0 0.0
      %714 = vmatpush1.msra.mxu0 0.0
      %715 = vmatprep.subr.mxu0 0.0
      %716 = vmatpush1.msra.mxu0 0.0
      %717 = vmatprep.subr.mxu0 0.0
      %718 = vmatpush1.msra.mxu0 0.0
      %719 = vmatprep.subr.mxu0 0.0
      %720 = vmatpush1.msra.mxu0 0.0
      %721 = vmatprep.subr.mxu0 0.0
      %722 = vmatpush1.msra.mxu0 0.0
      %723 = vmatprep.subr.mxu0 0.0
      %724 = vmatpush1.msra.mxu0 0.0
      %725 = vmatprep.subr.mxu0 0.0
      %726 = vmatpush1.msra.mxu0 0.0
      %727 = vmatprep.subr.mxu0 0.0
      %728 = vmatpush1.msra.mxu0 0.0
      %729 = vmatprep.subr.mxu0 0.0
      %730 = vmatpush1.msra.mxu0 0.0
      %731 = vmatprep.subr.mxu0 0.0
      %732 = vmatpush1.msra.mxu0 0.0
      %733 = vmatprep.subr.mxu0 0.0
      %734 = vmatpush1.msra.mxu0 0.0
      %735 = vmatprep.subr.mxu0 0.0
      %736 = vmatpush1.msra.mxu0 0.0
      %737 = vmatprep.subr.mxu0 0.0
      %738 = vmatpush1.msra.mxu0 0.0
      %739 = vmatprep.subr.mxu0 0.0
      %740 = vmatpush1.msra.mxu0 0.0
      %741 = vmatprep.subr.mxu0 0.0
      %742 = vmatpush1.msra.mxu0 0.0
      %743 = vmatprep.subr.mxu0 0.0
      %744 = vmatpush1.msra.mxu0 0.0
      %745 = vmatprep.subr.mxu0 0.0
      %746 = vmatpush1.msra.mxu0 0.0
      %747 = vmatprep.mubr.f32.mxu0 0.0
      %v748 = vand.u32 %v169, 4294901760
      %v749 = vsub.f32 %v169, %v748
      %v750 = vand.u32 %v749, 4294901760
      %751 = vmatmul.mubr.f32.gmra.mrb[0].mxu0 %v750
      %v752 = vpop.f32.mrb[0].mxu0
      %v753 = vadd.f32 %v619, %v752
      %v754 = vpop.f32.mrb[0].mxu0
      %755 = vmatprep.mubr.f32.mxu0 0.0
      %v756 = vand.u32 %v172, 4294901760
      %v757 = vsub.f32 %v172, %v756
      %v758 = vand.u32 %v757, 4294901760
      %759 = vmatmul.mubr.f32.gmra.mrb[0].mxu0 %v758
      %v760 = vpop.f32.mrb[0].mxu0
      %v761 = vadd.f32 %v626, %v760
      %v762 = vpop.f32.mrb[0].mxu0
      %763 = vmatprep.mubr.f32.mxu0 0.0
      %v764 = vand.u32 %v175, 4294901760
      %v765 = vsub.f32 %v175, %v764
      %v766 = vand.u32 %v765, 4294901760
      %767 = vmatmul.mubr.f32.gmra.mrb[0].mxu0 %v766
      %v768 = vpop.f32.mrb[0].mxu0
      %v769 = vadd.f32 %v633, %v768
      %v770 = vpop.f32.mrb[0].mxu0
      %771 = vmatprep.mubr.f32.mxu0 0.0
      %v772 = vand.u32 %v178, 4294901760
      %v773 = vsub.f32 %v178, %v772
      %v774 = vand.u32 %v773, 4294901760
      %775 = vmatmul.mubr.f32.gmra.mrb[0].mxu0 %v774
      %v776 = vpop.f32.mrb[0].mxu0
      %v777 = vadd.f32 %v640, %v776
      %v778 = vpop.f32.mrb[0].mxu0
      %779 = vmatprep.mubr.f32.mxu0 0.0
      %v780 = vand.u32 %v181, 4294901760
      %v781 = vsub.f32 %v181, %v780
      %v782 = vand.u32 %v781, 4294901760
      %783 = vmatmul.mubr.f32.gmra.mrb[0].mxu0 %v782
      %v784 = vpop.f32.mrb[0].mxu0
      %v785 = vadd.f32 %v647, %v784
      %v786 = vpop.f32.mrb[0].mxu0
      %787 = vmatprep.mubr.f32.mxu0 0.0
      %v788 = vand.u32 %v184, 4294901760
      %v789 = vsub.f32 %v184, %v788
      %v790 = vand.u32 %v789, 4294901760
      %791 = vmatmul.mubr.f32.gmra.mrb[0].mxu0 %v790
      %v792 = vpop.f32.mrb[0].mxu0
      %v793 = vadd.f32 %v654, %v792
      %v794 = vpop.f32.mrb[0].mxu0
      %795 = vmatprep.mubr.f32.mxu0 0.0
      %v796 = vand.u32 %v187, 4294901760
      %v797 = vsub.f32 %v187, %v796
      %v798 = vand.u32 %v797, 4294901760
      %799 = vmatmul.mubr.f32.gmra.mrb[0].mxu0 %v798
      %v800 = vpop.f32.mrb[0].mxu0
      %v801 = vadd.f32 %v661, %v800
      %v802 = vpop.f32.mrb[0].mxu0
      %803 = vmatprep.mubr.f32.mxu0 0.0
      %v804 = vand.u32 %v190, 4294901760
      %v805 = vsub.f32 %v190, %v804
      %v806 = vand.u32 %v805, 4294901760
      %807 = vmatmul.mubr.f32.gmra.mrb[0].mxu0 %v806
      %v808 = vpop.f32.mrb[0].mxu0
      %v809 = vadd.f32 %v668, %v808
      %v810 = vpop.f32.mrb[0].mxu0
      %811 = vdwg.mxu0
      %812 = vmatprep.subr.mxu0 0.0
      %v813 = vand.u32 %v155, 4294901760
      %v814 = vsub.f32 %v155, %v813
      %v815 = vand.u32 %v814, 4294901760
      %816 = vmatpush1.msra.mxu0 %v815
      %817 = vmatprep.subr.mxu0 0.0
      %v818 = vand.u32 %v156, 4294901760
      %v819 = vsub.f32 %v156, %v818
      %v820 = vand.u32 %v819, 4294901760
      %821 = vmatpush1.msra.mxu0 %v820
      %822 = vmatprep.subr.mxu0 0.0
      %v823 = vand.u32 %v157, 4294901760
      %v824 = vsub.f32 %v157, %v823
      %v825 = vand.u32 %v824, 4294901760
      %826 = vmatpush1.msra.mxu0 %v825
      %827 = vmatprep.subr.mxu0 0.0
      %v828 = vand.u32 %v158, 4294901760
      %v829 = vsub.f32 %v158, %v828
      %v830 = vand.u32 %v829, 4294901760
      %831 = vmatpush1.msra.mxu0 %v830
      %832 = vmatprep.subr.mxu0 0.0
      %v833 = vand.u32 %v159, 4294901760
      %v834 = vsub.f32 %v159, %v833
      %v835 = vand.u32 %v834, 4294901760
      %836 = vmatpush1.msra.mxu0 %v835
      %837 = vmatprep.subr.mxu0 0.0
      %v838 = vand.u32 %v160, 4294901760
      %v839 = vsub.f32 %v160, %v838
      %v840 = vand.u32 %v839, 4294901760
      %841 = vmatpush1.msra.mxu0 %v840
      %842 = vmatprep.subr.mxu0 0.0
      %v843 = vand.u32 %v161, 4294901760
      %v844 = vsub.f32 %v161, %v843
      %v845 = vand.u32 %v844, 4294901760
      %846 = vmatpush1.msra.mxu0 %v845
      %847 = vmatprep.subr.mxu0 0.0
      %v848 = vand.u32 %v162, 4294901760
      %v849 = vsub.f32 %v162, %v848
      %v850 = vand.u32 %v849, 4294901760
      %851 = vmatpush1.msra.mxu0 %v850
      %852 = vmatprep.subr.mxu0 0.0
      %v853 = vand.u32 %v163, 4294901760
      %v854 = vsub.f32 %v163, %v853
      %v855 = vand.u32 %v854, 4294901760
      %856 = vmatpush1.msra.mxu0 %v855
      %857 = vmatprep.subr.mxu0 0.0
      %v858 = vand.u32 %v164, 4294901760
      %v859 = vsub.f32 %v164, %v858
      %v860 = vand.u32 %v859, 4294901760
      %861 = vmatpush1.msra.mxu0 %v860
      %862 = vmatprep.subr.mxu0 0.0
      %v863 = vand.u32 %v165, 4294901760
      %v864 = vsub.f32 %v165, %v863
      %v865 = vand.u32 %v864, 4294901760
      %866 = vmatpush1.msra.mxu0 %v865
      %867 = vmatprep.subr.mxu0 0.0
      %v868 = vand.u32 %v194, 4294901760
      %v869 = vsub.f32 %v194, %v868
      %v870 = vand.u32 %v869, 4294901760
      %871 = vmatpush1.msra.mxu0 %v870
      %872 = vmatprep.subr.mxu0 0.0
      %873 = vmatpush1.msra.mxu0 0.0
      %874 = vmatprep.subr.mxu0 0.0
      %875 = vmatpush1.msra.mxu0 0.0
      %876 = vmatprep.subr.mxu0 0.0
      %877 = vmatpush1.msra.mxu0 0.0
      %878 = vmatprep.subr.mxu0 0.0
      %879 = vmatpush1.msra.mxu0 0.0
      %880 = vmatprep.subr.mxu0 0.0
      %881 = vmatpush1.msra.mxu0 0.0
      %882 = vmatprep.subr.mxu0 0.0
      %883 = vmatpush1.msra.mxu0 0.0
      %884 = vmatprep.subr.mxu0 0.0
      %885 = vmatpush1.msra.mxu0 0.0
      %886 = vmatprep.subr.mxu0 0.0
      %887 = vmatpush1.msra.mxu0 0.0
      %888 = vmatprep.subr.mxu0 0.0
      %889 = vmatpush1.msra.mxu0 0.0
      %890 = vmatprep.subr.mxu0 0.0
      %891 = vmatpush1.msra.mxu0 0.0
      %892 = vmatprep.subr.mxu0 0.0
      %893 = vmatpush1.msra.mxu0 0.0
      %894 = vmatprep.subr.mxu0 0.0
      %895 = vmatpush1.msra.mxu0 0.0
      %896 = vmatprep.subr.mxu0 0.0
      %897 = vmatpush1.msra.mxu0 0.0
      %898 = vmatprep.subr.mxu0 0.0
      %899 = vmatpush1.msra.mxu0 0.0
      %900 = vmatprep.subr.mxu0 0.0
      %901 = vmatpush1.msra.mxu0 0.0
      %902 = vmatprep.subr.mxu0 0.0
      %903 = vmatpush1.msra.mxu0 0.0
      %904 = vmatprep.subr.mxu0 0.0
      %905 = vmatpush1.msra.mxu0 0.0
      %906 = vmatprep.subr.mxu0 0.0
      %907 = vmatpush1.msra.mxu0 0.0
      %908 = vmatprep.subr.mxu0 0.0
      %909 = vmatpush1.msra.mxu0 0.0
      %910 = vmatprep.subr.mxu0 0.0
      %911 = vmatpush1.msra.mxu0 0.0
      %912 = vmatprep.mubr.f32.mxu0 0.0
      %v913 = vand.u32 %v169, 4294901760
      %914 = vmatmul.mubr.f32.gmra.mrb[0].mxu0 %v913
      %v915 = vpop.f32.mrb[0].mxu0
      %v916 = vadd.f32 %v753, %v915
      %v917 = vpop.f32.mrb[0].mxu0
      %918 = vmatprep.mubr.f32.mxu0 0.0
      %v919 = vand.u32 %v172, 4294901760
      %920 = vmatmul.mubr.f32.gmra.mrb[0].mxu0 %v919
      %v921 = vpop.f32.mrb[0].mxu0
      %v922 = vadd.f32 %v761, %v921
      %v923 = vpop.f32.mrb[0].mxu0
      %924 = vmatprep.mubr.f32.mxu0 0.0
      %v925 = vand.u32 %v175, 4294901760
      %926 = vmatmul.mubr.f32.gmra.mrb[0].mxu0 %v925
      %v927 = vpop.f32.mrb[0].mxu0
      %v928 = vadd.f32 %v769, %v927
      %v929 = vpop.f32.mrb[0].mxu0
      %930 = vmatprep.mubr.f32.mxu0 0.0
      %v931 = vand.u32 %v178, 4294901760
      %932 = vmatmul.mubr.f32.gmra.mrb[0].mxu0 %v931
      %v933 = vpop.f32.mrb[0].mxu0
      %v934 = vadd.f32 %v777, %v933
      %v935 = vpop.f32.mrb[0].mxu0
      %936 = vmatprep.mubr.f32.mxu0 0.0
      %v937 = vand.u32 %v181, 4294901760
      %938 = vmatmul.mubr.f32.gmra.mrb[0].mxu0 %v937
      %v939 = vpop.f32.mrb[0].mxu0
      %v940 = vadd.f32 %v785, %v939
      %v941 = vpop.f32.mrb[0].mxu0
      %942 = vmatprep.mubr.f32.mxu0 0.0
      %v943 = vand.u32 %v184, 4294901760
      %944 = vmatmul.mubr.f32.gmra.mrb[0].mxu0 %v943
      %v945 = vpop.f32.mrb[0].mxu0
      %v946 = vadd.f32 %v793, %v945
      %v947 = vpop.f32.mrb[0].mxu0
      %948 = vmatprep.mubr.f32.mxu0 0.0
      %v949 = vand.u32 %v187, 4294901760
      %950 = vmatmul.mubr.f32.gmra.mrb[0].mxu0 %v949
      %v951 = vpop.f32.mrb[0].mxu0
      %v952 = vadd.f32 %v801, %v951
      %v953 = vpop.f32.mrb[0].mxu0
      %954 = vmatprep.mubr.f32.mxu0 0.0
      %v955 = vand.u32 %v190, 4294901760
      %956 = vmatmul.mubr.f32.gmra.mrb[0].mxu0 %v955
      %v957 = vpop.f32.mrb[0].mxu0
      %v958 = vadd.f32 %v809, %v957
      %v959 = vpop.f32.mrb[0].mxu0
      %960 = vdwg.mxu0
      %961 = vmatprep.subr.mxu0 0.0
      %v962 = vand.u32 %v155, 4294901760
      %963 = vmatpush1.msra.mxu0 %v962
      %964 = vmatprep.subr.mxu0 0.0
      %v965 = vand.u32 %v156, 4294901760
      %966 = vmatpush1.msra.mxu0 %v965
      %967 = vmatprep.subr.mxu0 0.0
      %v968 = vand.u32 %v157, 4294901760
      %969 = vmatpush1.msra.mxu0 %v968
      %970 = vmatprep.subr.mxu0 0.0
      %v971 = vand.u32 %v158, 4294901760
      %972 = vmatpush1.msra.mxu0 %v971
      %973 = vmatprep.subr.mxu0 0.0
      %v974 = vand.u32 %v159, 4294901760
      %975 = vmatpush1.msra.mxu0 %v974
      %976 = vmatprep.subr.mxu0 0.0
      %v977 = vand.u32 %v160, 4294901760
      %978 = vmatpush1.msra.mxu0 %v977
      %979 = vmatprep.subr.mxu0 0.0
      %v980 = vand.u32 %v161, 4294901760
      %981 = vmatpush1.msra.mxu0 %v980
      %982 = vmatprep.subr.mxu0 0.0
      %v983 = vand.u32 %v162, 4294901760
      %984 = vmatpush1.msra.mxu0 %v983
      %985 = vmatprep.subr.mxu0 0.0
      %v986 = vand.u32 %v163, 4294901760
      %987 = vmatpush1.msra.mxu0 %v986
      %988 = vmatprep.subr.mxu0 0.0
      %v989 = vand.u32 %v164, 4294901760
      %990 = vmatpush1.msra.mxu0 %v989
      %991 = vmatprep.subr.mxu0 0.0
      %v992 = vand.u32 %v165, 4294901760
      %993 = vmatpush1.msra.mxu0 %v992
      %994 = vmatprep.subr.mxu0 0.0
      %v995 = vand.u32 %v194, 4294901760
      %996 = vmatpush1.msra.mxu0 %v995
      %997 = vmatprep.subr.mxu0 0.0
      %998 = vmatpush1.msra.mxu0 0.0
      %999 = vmatprep.subr.mxu0 0.0
      %1000 = vmatpush1.msra.mxu0 0.0
      %1001 = vmatprep.subr.mxu0 0.0
      %1002 = vmatpush1.msra.mxu0 0.0
      %1003 = vmatprep.subr.mxu0 0.0
      %1004 = vmatpush1.msra.mxu0 0.0
      %1005 = vmatprep.subr.mxu0 0.0
      %1006 = vmatpush1.msra.mxu0 0.0
      %1007 = vmatprep.subr.mxu0 0.0
      %1008 = vmatpush1.msra.mxu0 0.0
      %1009 = vmatprep.subr.mxu0 0.0
      %1010 = vmatpush1.msra.mxu0 0.0
      %1011 = vmatprep.subr.mxu0 0.0
      %1012 = vmatpush1.msra.mxu0 0.0
      %1013 = vmatprep.subr.mxu0 0.0
      %1014 = vmatpush1.msra.mxu0 0.0
      %1015 = vmatprep.subr.mxu0 0.0
      %1016 = vmatpush1.msra.mxu0 0.0
      %1017 = vmatprep.subr.mxu0 0.0
      %1018 = vmatpush1.msra.mxu0 0.0
      %1019 = vmatprep.subr.mxu0 0.0
      %1020 = vmatpush1.msra.mxu0 0.0
      %1021 = vmatprep.subr.mxu0 0.0
      %1022 = vmatpush1.msra.mxu0 0.0
      %1023 = vmatprep.subr.mxu0 0.0
      %1024 = vmatpush1.msra.mxu0 0.0
      %1025 = vmatprep.subr.mxu0 0.0
      %1026 = vmatpush1.msra.mxu0 0.0
      %1027 = vmatprep.subr.mxu0 0.0
      %1028 = vmatpush1.msra.mxu0 0.0
      %1029 = vmatprep.subr.mxu0 0.0
      %1030 = vmatpush1.msra.mxu0 0.0
      %1031 = vmatprep.subr.mxu0 0.0
      %1032 = vmatpush1.msra.mxu0 0.0
      %1033 = vmatprep.subr.mxu0 0.0
      %1034 = vmatpush1.msra.mxu0 0.0
      %1035 = vmatprep.subr.mxu0 0.0
      %1036 = vmatpush1.msra.mxu0 0.0
      %1037 = vmatprep.mubr.f32.mxu0 0.0
      %v1038 = vand.u32 %v169, 4294901760
      %1039 = vmatmul.mubr.f32.gmra.mrb[0].mxu0 %v1038
      %v1040 = vpop.f32.mrb[0].mxu0
      %v1041 = vadd.f32 %v916, %v1040
      %v1042 = vpop.f32.mrb[0].mxu0
      %1043 = vmatprep.mubr.f32.mxu0 0.0
      %v1044 = vand.u32 %v172, 4294901760
      %1045 = vmatmul.mubr.f32.gmra.mrb[0].mxu0 %v1044
      %v1046 = vpop.f32.mrb[0].mxu0
      %v1047 = vadd.f32 %v922, %v1046
      %v1048 = vpop.f32.mrb[0].mxu0
      %1049 = vmatprep.mubr.f32.mxu0 0.0
      %v1050 = vand.u32 %v175, 4294901760
      %1051 = vmatmul.mubr.f32.gmra.mrb[0].mxu0 %v1050
      %v1052 = vpop.f32.mrb[0].mxu0
      %v1053 = vadd.f32 %v928, %v1052
      %v1054 = vpop.f32.mrb[0].mxu0
      %1055 = vmatprep.mubr.f32.mxu0 0.0
      %v1056 = vand.u32 %v178, 4294901760
      %1057 = vmatmul.mubr.f32.gmra.mrb[0].mxu0 %v1056
      %v1058 = vpop.f32.mrb[0].mxu0
      %v1059 = vadd.f32 %v934, %v1058
      %v1060 = vpop.f32.mrb[0].mxu0
      %1061 = vmatprep.mubr.f32.mxu0 0.0
      %v1062 = vand.u32 %v181, 4294901760
      %1063 = vmatmul.mubr.f32.gmra.mrb[0].mxu0 %v1062
      %v1064 = vpop.f32.mrb[0].mxu0
      %v1065 = vadd.f32 %v940, %v1064
      %v1066 = vpop.f32.mrb[0].mxu0
      %1067 = vmatprep.mubr.f32.mxu0 0.0
      %v1068 = vand.u32 %v184, 4294901760
      %1069 = vmatmul.mubr.f32.gmra.mrb[0].mxu0 %v1068
      %v1070 = vpop.f32.mrb[0].mxu0
      %v1071 = vadd.f32 %v946, %v1070
      %v1072 = vpop.f32.mrb[0].mxu0
      %1073 = vmatprep.mubr.f32.mxu0 0.0
      %v1074 = vand.u32 %v187, 4294901760
      %1075 = vmatmul.mubr.f32.gmra.mrb[0].mxu0 %v1074
      %v1076 = vpop.f32.mrb[0].mxu0
      %v1077 = vadd.f32 %v952, %v1076
      %v1078 = vpop.f32.mrb[0].mxu0
      %1079 = vmatprep.mubr.f32.mxu0 0.0
      %v1080 = vand.u32 %v190, 4294901760
      %1081 = vmatmul.mubr.f32.gmra.mrb[0].mxu0 %v1080
      %v1082 = vpop.f32.mrb[0].mxu0
      %v1083 = vadd.f32 %v958, %v1082
      %v1084 = vpop.f32.mrb[0].mxu0
      %1085 = vdwg.mxu0
      %vm1086 = vcmask 48128
      %1087 = vst.msk [vmem:[%s145] sm:$0xff] %vm1086, %v1041
      %1088 = vst.msk [vmem:[%s145 + $0x8] sm:$0xff] %vm1086, %v1047
      %1089 = vst.msk [vmem:[%s145 + $0x10] sm:$0xff] %vm1086, %v1053
      %1090 = vst.msk [vmem:[%s145 + $0x18] sm:$0xff] %vm1086, %v1059
      %1091 = vst.msk [vmem:[%s145 + $0x20] sm:$0xff] %vm1086, %v1065
      %1092 = vst.msk [vmem:[%s145 + $0x28] sm:$0xff] %vm1086, %v1071
      %1093 = vst.msk [vmem:[%s145 + $0x30] sm:$0xff] %vm1086, %v1077
      %1094 = vst.msk [vmem:[%s145 + $0x38] sm:$0xff] %vm1086, %v1083
      %s1095 = smul.u32 8, %s13
      %p1096 = scmp.lt.s32.totalorder %s1095, 15
      %s1097 = scalar_select %p1096, %s1095, 15
      %s1098 = smul.addr %s1097, 8
      %s1099 = scalar_lea.vmem %s2, %s1098
      // Predicated region
      $region29: #{tpu_custom_call.1} parent=27 // pred_check
        %p1100 = pneg %p78
      $region30: #{tpu_custom_call.1} parent=27 // pred_check_branch
        %1102 = sbr.rel (%p1100) target = $region32
      $region31: #{tpu_custom_call.1} parent=27 // pred_region
        %s1103 = smul.u32 8, %s13
      $region32: #{tpu_custom_call.1} parent=27 // pred_fallthru
        _
    $region28: #{tpu_custom_call.1} parent=5 // pred_fallthru
      _
    %p1104 = scmp.le.s32.totalorder 2, %s8
    // Predicated region
    $region33: #{tpu_custom_call.1} parent=5 // pred_check
      %p1105 = pneg %p1104
    $region34: #{tpu_custom_call.1} parent=5 // pred_check_branch
      %1107 = sbr.rel (%p1105) target = $region36
    $region35: #{tpu_custom_call.1} parent=5 // pred_region
      %s1108 = ssub.s32 %s8, 2
      // Predicated region
      $region37: #{tpu_custom_call.1} parent=35 // pred_check
        %p1109 = pneg %p84
      $region38: #{tpu_custom_call.1} parent=35 // pred_check_branch
        %1111 = sbr.rel (%p1109) target = $region40
      $region39: #{tpu_custom_call.1} parent=35 // pred_region
        %s1112 = smul.u32 8, %s14
        %p1113 = scmp.lt.s32.totalorder %s1112, 15
        %s1114 = scalar_select %p1113, %s1112, 15
        %s1115 = smul.addr %s1114, 8
        %s1116 = scalar_lea.vmem %s2, %s1115
      $region40: #{tpu_custom_call.1} parent=35 // pred_fallthru
        _
    $region36: #{tpu_custom_call.1} parent=5 // pred_fallthru
      _
  $region6: #{tpu_custom_call.1} parent=0 // loop_footer
    %s12 = sadd.s32 1, %s8
  $region7: #{tpu_custom_call.1} parent=0 // loop_footer_branch
    %7 = sbr.rel target = $region3
  $region8: #{tpu_custom_call.1} parent=0 // loop_exit
    _

</llo_original>
